<compile_context>
chip_gen: v6e
topology: v6e:2x2x1
jax: 0.10.0
libtpu: 0.0.40
codegen_flags: <defaults>
</compile_context>

<pallas_src>
import functools

import jax
import jax.numpy as jnp
from jax.experimental import pallas as pl
from jax.experimental.pallas import tpu as pltpu

_TILE_CAP = 32768                      # lanes; >=512 already ~85% of HBM roofline
_DEFAULT_VMEM_BUDGET = 16 * 1024 * 1024


def _ce_kernel(*refs, ignore_index, hw, tile_hw, inner, has_weight):
    """Weighted cross-entropy partial sums for one (image, super-tile, tile) block.

    Layout: pixels on the 128-lane axis, classes on the sublane axis.

    refs (weighted):   w_ref(1,C,1), x_ref(1,C,T), t_ref(1,1,T),
                       lsum(1,1,1), wsum(1,1,1), acc_l(1,1,T), acc_w(1,1,T)
    refs (unweighted): same without w_ref.
    """
    if has_weight:
        w_ref, x_ref, t_ref, lsum_ref, wsum_ref, acc_l, acc_w = refs
    else:
        x_ref, t_ref, lsum_ref, wsum_ref, acc_l, acc_w = refs
        w_ref = None

    p = pl.program_id(1)
    t = pl.program_id(2)
    nt = pl.num_programs(2)

    @pl.when(t == 0)
    def _():
        acc_l[...] = jnp.zeros_like(acc_l)
        acc_w[...] = jnp.zeros_like(acc_w)

    logits = x_ref[...].astype(jnp.float32)                   # (1, C, TILE)
    tgt = t_ref[...]                                          # (1, 1, TILE) i32
    num_classes = logits.shape[1]

    # Global pixel index per lane column: masks ragged tail AND padded tiles
    # beyond the real block count (those are clamped onto the last block by
    # the index_map and zeroed here).
    # NOTE: out-of-range targets contribute 0 loss / 0 weight instead of
    # raising like PyTorch.
    lane = jax.lax.broadcasted_iota(jnp.int32, tgt.shape, 2)  # (1, 1, TILE)
    gpix = (p * inner + t) * tile_hw + lane
    valid = ((gpix < hw)
             & (tgt != ignore_index)
             & (tgt >= 0)
             & (tgt < num_classes))

    # Numerically stable log-sum-exp over the class (sublane) axis.
    # TODO(synk): chunk the class axis (online LSE via lax.fori_loop) for very
    # large C (>~128) to bound vreg pressure.
    m = jnp.max(logits, axis=1, keepdims=True)                # (1, 1, TILE)
    lse = jnp.log(jnp.sum(jnp.exp(logits - m), axis=1, keepdims=True)) + m

    # Select-based one-hot gather (no int->f32 cast, no extra multiply).
    cls = jax.lax.broadcasted_iota(jnp.int32, logits.shape, 1)  # (1, C, TILE)
    hit = cls == tgt                                            # (1, C, TILE)
    chosen = jnp.sum(jnp.where(hit, logits, 0.0), axis=1, keepdims=True)

    loss = lse - chosen                                         # (1, 1, TILE)
    if has_weight:
        w_px = jnp.sum(jnp.where(hit, w_ref[...], 0.0), axis=1, keepdims=True)
        loss = loss * w_px
        wsum_term = jnp.where(valid, w_px, 0.0)
    else:
        wsum_term = valid.astype(jnp.float32)

    # jnp.where (select) so NaN/Inf read from the undefined tail of the last
    # block never reaches the accumulator.
    acc_l[...] += jnp.where(valid, loss, 0.0)
    acc_w[...] += wsum_term

    @pl.when(t == nt - 1)
    def _():
        # Single cross-lane reduction per (image, super-tile), epilogue only.
        lsum_ref[...] = jnp.sum(acc_l[...], axis=2, keepdims=True)
        wsum_ref[...] = jnp.sum(acc_w[...], axis=2, keepdims=True)


def cross_entropy_loss(y_pred, y_true, weight=None, ignore_index=-100,
                       reduction="mean", tile_hw=None,
                       vmem_budget_bytes=_DEFAULT_VMEM_BUDGET):
    """Matches torch.nn.CrossEntropyLoss(weight, ignore_index, reduction) fwd.

    y_pred: (N, C, H, W) float logits   y_true: (N, H, W) int class indices
    Returns a scalar float32 for reduction in {'mean', 'sum'}.
    """
    N, C, H, W = y_pred.shape
    HW = H * W

    # NCHW is already channel-contiguous per image -> free reshapes, no
    # transpose and no full-slab pad.
    logits = y_pred.reshape(N, C, HW)
    # TODO(synk): accept int16/int8 targets end-to-end to shave target HBM traffic.
    targets = y_true.reshape(N, 1, HW).astype(jnp.int32)

    has_weight = weight is not None
    if has_weight:
        w = jnp.asarray(weight, jnp.float32).reshape(1, C, 1)

    # ---- VMEM bytes per lane column, WITH (8,128)/sublane padding ----
    isz = jnp.dtype(y_pred.dtype).itemsize
    sub_pack = max(1, 4 // isz) * 8            # sublane multiple: 8 f32, 16 bf16
    pad_c = pl.cdiv(C, sub_pack) * sub_pack
    per_col = (2 * pad_c * isz                 # logits, double-buffered
               + 2 * 8 * 4                     # i32 targets, 8-sublane pad, 2 bufs
               + 2 * 8 * 4)                    # two f32 accumulators, 8-sublane pad
    if tile_hw is None:
        tile_hw = (vmem_budget_bytes // per_col) // 128 * 128
        tile_hw = max(128, min(tile_hw, _TILE_CAP))
    if HW <= 128:
        tile_hw = HW                           # block == full dim (always legal)
    else:
        tile_hw = min(tile_hw, pl.cdiv(HW, 128) * 128)
        tile_hw = max(128, (tile_hw // 128) * 128)

    total_tiles = pl.cdiv(HW, tile_hw)
    # Pixel-level parallel super-tile axis so both TensorCores (v7x megacore)
    # stay busy even when the batch axis alone cannot feed them.
    P = 2 if (N < 2 and total_tiles >= 2) else 1
    inner = pl.cdiv(total_tiles, P)
    last_blk = total_tiles - 1

    def _pix_idx(n, p, t):
        # Clamp padded trailing tiles onto the last real block; the in-kernel
        # mask zeroes their contribution (re-reads a block, never reads OOB).
        return (n, 0, jnp.minimum(p * inner + t, last_blk))

    in_specs = [pl.BlockSpec((1, C, tile_hw), _pix_idx),        # logits
                pl.BlockSpec((1, 1, tile_hw), _pix_idx)]        # targets
    args = [logits, targets]
    if has_weight:
        in_specs = [pl.BlockSpec((1, C, 1), lambda n, p, t: (0, 0, 0))] + in_specs
        args = [w] + args

    out_idx = lambda n, p, t: (n * P + p, 0, 0)

    kernel = functools.partial(_ce_kernel, ignore_index=ignore_index, hw=HW,
                               tile_hw=tile_hw, inner=inner,
                               has_weight=has_weight)

    # Generation-aware VMEM limit (v7x only has 64 MiB physical VMEM/TC).
    vmem_cap = 64 * 1024 * 1024
    try:
        vmem_cap = int(getattr(pltpu.get_tpu_info(), "vmem_capacity_bytes",
                               vmem_cap))
    except Exception:
        pass
    vmem_limit = int(min(48 * 1024 * 1024, 0.6 * vmem_cap))

    cost = pl.CostEstimate(
        flops=6 * N * HW * C,
        transcendentals=N * HW * (C + 1),
        bytes_accessed=N * HW * (C * isz + 4) + 8 * N * P)

    lsum, wsum = pl.pallas_call(
        kernel,
        out_shape=(jax.ShapeDtypeStruct((N * P, 1, 1), jnp.float32),
                   jax.ShapeDtypeStruct((N * P, 1, 1), jnp.float32)),
        grid_spec=pltpu.PrefetchScalarGridSpec(
            num_scalar_prefetch=0,
            grid=(N, P, inner),
            in_specs=in_specs,
            out_specs=[pl.BlockSpec((1, 1, 1), out_idx),
                       pl.BlockSpec((1, 1, 1), out_idx)],
            scratch_shapes=[pltpu.VMEM((1, 1, tile_hw), jnp.float32),
                            pltpu.VMEM((1, 1, tile_hw), jnp.float32)],
        ),
        compiler_params=pltpu.CompilerParams(
            dimension_semantics=("parallel", "parallel", "arbitrary"),
            vmem_limit_bytes=vmem_limit),
        cost_estimate=cost,
    )(*args)

    total_loss = jnp.sum(lsum)
    if reduction == "sum":
        return total_loss
    if reduction == "mean":
        # NaN when every target equals ignore_index (matches PyTorch).
        return total_loss / jnp.sum(wsum)
    # TODO(synk): reduction='none' (per-pixel loss map) not implemented.
    raise NotImplementedError(f"reduction={reduction!r} not supported")


def _reference_ce(y_pred, y_true, weight=None, ignore_index=-100):
    """Pure-JAX reference mirroring torch.nn.CrossEntropyLoss(reduction='mean')."""
    N, C, H, W = y_pred.shape
    logits = jnp.transpose(y_pred, (0, 2, 3, 1)).reshape(-1, C).astype(jnp.float32)
    tgt = y_true.reshape(-1).astype(jnp.int32)
    if weight is None:
        weight = jnp.ones((C,), jnp.float32)
    weight = jnp.asarray(weight, jnp.float32)
    logz = jax.nn.logsumexp(logits, axis=-1)
    safe_tgt = jnp.where(tgt == ignore_index, 0, tgt)
    chosen = jnp.take_along_axis(logits, safe_tgt[:, None], axis=-1)[:, 0]
    valid = (tgt != ignore_index).astype(jnp.float32)
    wv = weight[safe_tgt] * valid
    return jnp.sum((logz - chosen) * wv) / jnp.sum(wv)


if __name__ == "__main__":
    key = jax.random.PRNGKey(0)
    k1, k2, k3 = jax.random.split(key, 3)

    N, C, H, W = 2, 4, 16, 16
    y_pred = jax.random.normal(k1, (N, C, H, W), jnp.float32)
    y_true = jax.random.randint(k2, (N, H, W), 0, C, jnp.int32)
    # sprinkle some ignore_index entries to exercise masking
    ignore_mask = jax.random.uniform(k3, (N, H, W)) < 0.1
    y_true = jnp.where(ignore_mask, jnp.int32(-100), y_true)

    # unweighted, mean
    loss = jax.block_until_ready(cross_entropy_loss(y_pred, y_true))
    ref = _reference_ce(y_pred, y_true)
    assert jnp.allclose(loss, ref, rtol=1e-5, atol=1e-5), (loss, ref)

    # class-weighted, mean
    cls_w = jnp.array([0.5, 1.0, 2.0, 4.0], jnp.float32)
    loss_w = jax.block_until_ready(cross_entropy_loss(y_pred, y_true, weight=cls_w))
    ref_w = _reference_ce(y_pred, y_true, weight=cls_w)
    assert jnp.allclose(loss_w, ref_w, rtol=1e-5, atol=1e-5), (loss_w, ref_w)

    # batch=1 multi-tile path: exercises the pixel-parallel split (P=2), the
    # clamped padded tile, and the ragged-tail mask (HW=300, tile=128).
    k4, k5 = jax.random.split(k1)
    H2, W2 = 15, 20
    yp2 = jax.random.normal(k4, (1, C, H2, W2), jnp.float32)
    yt2 = jax.random.randint(k5, (1, H2, W2), 0, C, jnp.int32)
    yt2 = yt2.at[0, 0, :5].set(-100)
    loss2 = jax.block_until_ready(
        cross_entropy_loss(yp2, yt2, weight=cls_w, tile_hw=128))
    ref2 = _reference_ce(yp2, yt2, weight=cls_w)
    assert jnp.allclose(loss2, ref2, rtol=1e-5, atol=1e-5), (loss2, ref2)

    print("KERNEL_OK")
</pallas_src>

<mosaic_0001>
module attributes {stable_mosaic.version = 11 : i64} {
  func.func @_ce_kernel(%arg0: i32, %arg1: i32, %arg2: i32, %arg3: memref<1x4x256xf32, #tpu.memory_space<vmem>>, %arg4: memref<1x1x256xi32, #tpu.memory_space<vmem>>, %arg5: memref<1x1x1xf32, #tpu.memory_space<vmem>>, %arg6: memref<1x1x1xf32, #tpu.memory_space<vmem>>, %arg7: memref<1x1x256xf32, #tpu.memory_space<vmem>>, %arg8: memref<1x1x256xf32, #tpu.memory_space<vmem>>) attributes {dimension_semantics = [#tpu.dimension_semantics<parallel>, #tpu.dimension_semantics<parallel>, #tpu.dimension_semantics<arbitrary>], iteration_bounds = array<i64: 2, 1, 1>, scalar_prefetch = 0 : i64, scratch_operands = 2 : i64, tpu.core_type = #tpu.core_type<tc>, window_params = [{transform_indices = @transform_0, window_bounds = array<i64: 1, 4, 256>}, {transform_indices = @transform_1, window_bounds = array<i64: 1, 1, 256>}, {transform_indices = @transform_2, window_bounds = array<i64: 1, 1, 1>}, {transform_indices = @transform_3, window_bounds = array<i64: 1, 1, 1>}]} {
    %c0_i32 = arith.constant 0 : i32
    %0 = arith.cmpi eq, %arg2, %c0_i32 : i32
    %1 = arith.extui %0 : i1 to i32
    %c0_i32_0 = arith.constant 0 : i32
    %2 = arith.cmpi ne, %1, %c0_i32_0 : i32
    scf.if %2 {
      %cst_26 = arith.constant 0.000000e+00 : f32
      %52 = vector.broadcast %cst_26 : f32 to vector<1x1x256xf32>
      %c0_27 = arith.constant 0 : index
      %c0_28 = arith.constant 0 : index
      %c0_29 = arith.constant 0 : index
      %53 = vector.load %arg7[%c0_27, %c0_28, %c0_29] : memref<1x1x256xf32, #tpu.memory_space<vmem>>, vector<1x1x256xf32>
      tpu.vector_store %arg7[%c0_27, %c0_28, %c0_29], %52 {strides = array<i32>} : memref<1x1x256xf32, #tpu.memory_space<vmem>>, vector<1x1x256xf32>,
      %cst_30 = arith.constant 0.000000e+00 : f32
      %54 = vector.broadcast %cst_30 : f32 to vector<1x1x256xf32>
      %c0_31 = arith.constant 0 : index
      %c0_32 = arith.constant 0 : index
      %c0_33 = arith.constant 0 : index
      %55 = vector.load %arg8[%c0_31, %c0_32, %c0_33] : memref<1x1x256xf32, #tpu.memory_space<vmem>>, vector<1x1x256xf32>
      tpu.vector_store %arg8[%c0_31, %c0_32, %c0_33], %54 {strides = array<i32>} : memref<1x1x256xf32, #tpu.memory_space<vmem>>, vector<1x1x256xf32>,
    } else {
    }
    %c0 = arith.constant 0 : index
    %c0_1 = arith.constant 0 : index
    %c0_2 = arith.constant 0 : index
    %3 = vector.load %arg3[%c0, %c0_1, %c0_2] : memref<1x4x256xf32, #tpu.memory_space<vmem>>, vector<1x4x256xf32>
    %c0_3 = arith.constant 0 : index
    %c0_4 = arith.constant 0 : index
    %c0_5 = arith.constant 0 : index
    %4 = vector.load %arg4[%c0_3, %c0_4, %c0_5] : memref<1x1x256xi32, #tpu.memory_space<vmem>>, vector<1x1x256xi32>
    %5 = tpu.iota {dimensions = array<i32: 2>} : vector<1x1x256xi32>
    %c1_i32 = arith.constant 1 : i32
    %6 = arith.muli %arg1, %c1_i32 : i32
    %7 = arith.addi %6, %arg2 : i32
    %c256_i32 = arith.constant 256 : i32
    %8 = arith.muli %7, %c256_i32 : i32
    %9 = vector.broadcast %8 : i32 to vector<1x1x256xi32>
    %10 = arith.addi %9, %5 : vector<1x1x256xi32>
    %c256_i32_6 = arith.constant 256 : i32
    %11 = vector.broadcast %c256_i32_6 : i32 to vector<1x1x256xi32>
    %12 = arith.cmpi slt, %10, %11 : vector<1x1x256xi32>
    %c-100_i32 = arith.constant -100 : i32
    %13 = vector.broadcast %c-100_i32 : i32 to vector<1x1x256xi32>
    %14 = arith.cmpi ne, %4, %13 : vector<1x1x256xi32>
    %15 = arith.andi %12, %14 : vector<1x1x256xi1>
    %c0_i32_7 = arith.constant 0 : i32
    %16 = vector.broadcast %c0_i32_7 : i32 to vector<1x1x256xi32>
    %17 = arith.cmpi sge, %4, %16 : vector<1x1x256xi32>
    %18 = arith.andi %15, %17 : vector<1x1x256xi1>
    %c4_i32 = arith.constant 4 : i32
    %19 = vector.broadcast %c4_i32 : i32 to vector<1x1x256xi32>
    %20 = arith.cmpi slt, %4, %19 : vector<1x1x256xi32>
    %21 = arith.andi %18, %20 : vector<1x1x256xi1>
    %cst = arith.constant dense<0xFF800000> : vector<1x256xf32>
    %22 = vector.multi_reduction <maximumf>, %3, %cst [1] : vector<1x4x256xf32> to vector<1x256xf32>
    %23 = vector.shape_cast %22 : vector<1x256xf32> to vector<1x1x256xf32>
    %24 = vector.broadcast %23 : vector<1x1x256xf32> to vector<1x4x256xf32>
    %25 = arith.subf %3, %24 : vector<1x4x256xf32>
    %26 = math.exp %25 : vector<1x4x256xf32>
    %cst_8 = arith.constant dense<0.000000e+00> : vector<1x256xf32>
    %27 = vector.multi_reduction <add>, %26, %cst_8 [1] : vector<1x4x256xf32> to vector<1x256xf32>
    %28 = vector.shape_cast %27 : vector<1x256xf32> to vector<1x1x256xf32>
    %29 = math.log %28 : vector<1x1x256xf32>
    %30 = arith.addf %29, %23 : vector<1x1x256xf32>
    %31 = tpu.iota {dimensions = array<i32: 1>} : vector<1x4x256xi32>
    %32 = vector.broadcast %4 : vector<1x1x256xi32> to vector<1x4x256xi32>
    %33 = arith.cmpi eq, %31, %32 : vector<1x4x256xi32>
    %cst_9 = arith.constant 0.000000e+00 : f32
    %34 = vector.broadcast %cst_9 : f32 to vector<1x4x256xf32>
    %35 = arith.select %33, %3, %34 : vector<1x4x256xi1>, vector<1x4x256xf32>
    %cst_10 = arith.constant dense<0.000000e+00> : vector<1x256xf32>
    %36 = vector.multi_reduction <add>, %35, %cst_10 [1] : vector<1x4x256xf32> to vector<1x256xf32>
    %37 = vector.shape_cast %36 : vector<1x256xf32> to vector<1x1x256xf32>
    %38 = arith.subf %30, %37 : vector<1x1x256xf32>
    %39 = arith.extui %21 : vector<1x1x256xi1> to vector<1x1x256xi32>
    %40 = arith.sitofp %39 : vector<1x1x256xi32> to vector<1x1x256xf32>
    %c0_11 = arith.constant 0 : index
    %c0_12 = arith.constant 0 : index
    %c0_13 = arith.constant 0 : index
    %41 = vector.load %arg7[%c0_11, %c0_12, %c0_13] : memref<1x1x256xf32, #tpu.memory_space<vmem>>, vector<1x1x256xf32>
    %cst_14 = arith.constant 0.000000e+00 : f32
    %42 = vector.broadcast %cst_14 : f32 to vector<1x1x256xf32>
    %43 = arith.select %21, %38, %42 : vector<1x1x256xi1>, vector<1x1x256xf32>
    %44 = arith.addf %41, %43 : vector<1x1x256xf32>
    %c0_15 = arith.constant 0 : index
    %c0_16 = arith.constant 0 : index
    %c0_17 = arith.constant 0 : index
    %45 = vector.load %arg7[%c0_15, %c0_16, %c0_17] : memref<1x1x256xf32, #tpu.memory_space<vmem>>, vector<1x1x256xf32>
    tpu.vector_store %arg7[%c0_15, %c0_16, %c0_17], %44 {strides = array<i32>} : memref<1x1x256xf32, #tpu.memory_space<vmem>>, vector<1x1x256xf32>,
    %c0_18 = arith.constant 0 : index
    %c0_19 = arith.constant 0 : index
    %c0_20 = arith.constant 0 : index
    %46 = vector.load %arg8[%c0_18, %c0_19, %c0_20] : memref<1x1x256xf32, #tpu.memory_space<vmem>>, vector<1x1x256xf32>
    %47 = arith.addf %46, %40 : vector<1x1x256xf32>
    %c0_21 = arith.constant 0 : index
    %c0_22 = arith.constant 0 : index
    %c0_23 = arith.constant 0 : index
    %48 = vector.load %arg8[%c0_21, %c0_22, %c0_23] : memref<1x1x256xf32, #tpu.memory_space<vmem>>, vector<1x1x256xf32>
    tpu.vector_store %arg8[%c0_21, %c0_22, %c0_23], %47 {strides = array<i32>} : memref<1x1x256xf32, #tpu.memory_space<vmem>>, vector<1x1x256xf32>,
    %c0_i32_24 = arith.constant 0 : i32
    %49 = arith.cmpi eq, %arg2, %c0_i32_24 : i32
    %50 = arith.extui %49 : i1 to i32
    %c0_i32_25 = arith.constant 0 : i32
    %51 = arith.cmpi ne, %50, %c0_i32_25 : i32
    scf.if %51 {
      %c0_26 = arith.constant 0 : index
      %c0_27 = arith.constant 0 : index
      %c0_28 = arith.constant 0 : index
      %52 = vector.load %arg7[%c0_26, %c0_27, %c0_28] : memref<1x1x256xf32, #tpu.memory_space<vmem>>, vector<1x1x256xf32>
      %cst_29 = arith.constant dense<0.000000e+00> : vector<1x1xf32>
      %53 = vector.multi_reduction <add>, %52, %cst_29 [2] : vector<1x1x256xf32> to vector<1x1xf32>
      %54 = vector.shape_cast %53 : vector<1x1xf32> to vector<1x1x1xf32>
      %c0_30 = arith.constant 0 : index
      %c0_31 = arith.constant 0 : index
      %c0_32 = arith.constant 0 : index
      %55 = vector.load %arg5[%c0_30, %c0_31, %c0_32] : memref<1x1x1xf32, #tpu.memory_space<vmem>>, vector<1x1x1xf32>
      tpu.vector_store %arg5[%c0_30, %c0_31, %c0_32], %54 {strides = array<i32>} : memref<1x1x1xf32, #tpu.memory_space<vmem>>, vector<1x1x1xf32>,
      %c0_33 = arith.constant 0 : index
      %c0_34 = arith.constant 0 : index
      %c0_35 = arith.constant 0 : index
      %56 = vector.load %arg8[%c0_33, %c0_34, %c0_35] : memref<1x1x256xf32, #tpu.memory_space<vmem>>, vector<1x1x256xf32>
      %cst_36 = arith.constant dense<0.000000e+00> : vector<1x1xf32>
      %57 = vector.multi_reduction <add>, %56, %cst_36 [2] : vector<1x1x256xf32> to vector<1x1xf32>
      %58 = vector.shape_cast %57 : vector<1x1xf32> to vector<1x1x1xf32>
      %c0_37 = arith.constant 0 : index
      %c0_38 = arith.constant 0 : index
      %c0_39 = arith.constant 0 : index
      %59 = vector.load %arg6[%c0_37, %c0_38, %c0_39] : memref<1x1x1xf32, #tpu.memory_space<vmem>>, vector<1x1x1xf32>
      tpu.vector_store %arg6[%c0_37, %c0_38, %c0_39], %58 {strides = array<i32>} : memref<1x1x1xf32, #tpu.memory_space<vmem>>, vector<1x1x1xf32>,
    } else {
    }
    return
  }
  func.func @transform_0(%arg0: i32, %arg1: i32, %arg2: i32) -> (i32, i32, i32) {
    %c1_i32 = arith.constant 1 : i32
    %0 = arith.muli %arg1, %c1_i32 : i32
    %1 = arith.addi %0, %arg2 : i32
    %c0_i32 = arith.constant 0 : i32
    %2 = arith.minsi %1, %c0_i32 : i32
    %c0_i32_0 = arith.constant 0 : i32
    %c0_i32_1 = arith.constant 0 : i32
    return %arg0, %c0_i32_0, %2 : i32, i32, i32
  }
  func.func @transform_1(%arg0: i32, %arg1: i32, %arg2: i32) -> (i32, i32, i32) {
    %c1_i32 = arith.constant 1 : i32
    %0 = arith.muli %arg1, %c1_i32 : i32
    %1 = arith.addi %0, %arg2 : i32
    %c0_i32 = arith.constant 0 : i32
    %2 = arith.minsi %1, %c0_i32 : i32
    %c0_i32_0 = arith.constant 0 : i32
    %c0_i32_1 = arith.constant 0 : i32
    return %arg0, %c0_i32_0, %2 : i32, i32, i32
  }
  func.func @transform_2(%arg0: i32, %arg1: i32, %arg2: i32) -> (i32, i32, i32) {
    %c1_i32 = arith.constant 1 : i32
    %0 = arith.muli %arg0, %c1_i32 : i32
    %1 = arith.addi %0, %arg1 : i32
    %c0_i32 = arith.constant 0 : i32
    %c0_i32_0 = arith.constant 0 : i32
    %c0_i32_1 = arith.constant 0 : i32
    return %1, %c0_i32, %c0_i32_0 : i32, i32, i32
  }
  func.func @transform_3(%arg0: i32, %arg1: i32, %arg2: i32) -> (i32, i32, i32) {
    %c1_i32 = arith.constant 1 : i32
    %0 = arith.muli %arg0, %c1_i32 : i32
    %1 = arith.addi %0, %arg1 : i32
    %c0_i32 = arith.constant 0 : i32
    %c0_i32_0 = arith.constant 0 : i32
    %c0_i32_1 = arith.constant 0 : i32
    return %1, %c0_i32, %c0_i32_0 : i32, i32, i32
  }
}

</mosaic_0001>

<llo_original>
// kernel: tpu_custom_call.1
$region0: #{tpu_custom_call.1}
  #allocation0 [shape = 'u32[]', space=smem, size = 0x4, offset = 0x4, fixed_abs, tag = 'smem constant byte address 0x4 - core index']
  #allocation1 [shape = 'u32[144,128]{1,0:T(1,128)}', space=vmem, size = 0x12000, scoped, tag = 'internal scratch']
  #allocation2 [shape = 'f32[1,1,256]{2,1,0:T(1,128)}', space=vmem, size = 0x400, scoped, tag = 'scratch operand']
  #allocation3 [shape = 'f32[1,1,256]{2,1,0:T(1,128)}', space=vmem, size = 0x400, scoped, tag = 'scratch operand']
  %s0 = inlined_call_operand.hbm [shape: f32[2,4,256], index: 0, kind: input, shape index: {}]
  %s1 = inlined_call_operand.hbm [shape: s32[2,1,256], index: 1, kind: input, shape index: {}]
  %s2 = inlined_call_operand.vmem [shape: f32[2,1,1], index: 2, kind: output, shape index: {0}]
  %s3 = inlined_call_operand.vmem [shape: f32[2,1,1], index: 3, kind: output, shape index: {1}]
  %4 = xla_tuple %s2, %s3
  %s5 = sld [smem:[#allocation0]]
  $region65: #{tpu_custom_call.1} parent=0
    _
  %s7 = ssub.s32 1, %s5
  %s8 = scalar_select 0, %s7, %s5
  $region1: #{tpu_custom_call.1} parent=0
    #allocation4 [shape = 'u8[8192]{0}', space=vmem, size = 0x2000, scoped, tag = 'input window, operand 0']
    #allocation5 [shape = 's32[2]{0}', space=sflag, size = 0x8, scoped, tag = 'scoped memory for tpu_custom_call.1']
    #allocation6 [shape = 'u8[2048]{0}', space=vmem, size = 0x800, scoped, tag = 'input window, operand 1']
    #allocation7 [shape = 's32[2]{0}', space=sflag, size = 0x8, scoped, tag = 'scoped memory for tpu_custom_call.1']
    %9 = vsyncpa [#allocation5], 0
    %s10 = scalar_lea.sflag [#allocation5], 1
    %11 = vsyncpa %s10, 0
    %12 = vsyncpa [#allocation7], 0
    %s13 = scalar_lea.sflag [#allocation7], 1
    %14 = vsyncpa %s13, 0
    loop: start=0, step=1, limit=4
    $region2: #{tpu_custom_call.1} parent=1 // loop_pre_header
      _
    $region3: #{tpu_custom_call.1} parent=1 // loop_header
      %s16 = sphi 0, %s20
      %p17 = scmp.ge.s32.totalorder %s16, 4
      %s23 = sphi 0, %s42
      %s24 = sphi 0, %s38
      %s25 = sphi 0, %s34
      %s26 = sphi 0, %s23
      %s27 = sphi 0, %s24
      %s28 = sphi 0, %s25
      %s29 = sphi 0, %s26
      %s30 = sphi 0, %s27
      %s31 = sphi 0, %s28
      %s53 = sphi 0, %s55
      %s56 = sphi 0, %s53
      %s57 = sphi 0, %s56
      %s73 = sphi 0, %s57
      %s87 = sphi 0, %s89
      %s90 = sphi 0, %s87
      %s91 = sphi 0, %s90
      %s107 = sphi 0, %s91
      %s115 = sphi 0, %s117
      %s118 = sphi 0, %s115
      %s119 = sphi 0, %s118
      %s135 = sphi 0, %s119
      %s143 = sphi 0, %s145
      %s146 = sphi 0, %s143
      %s147 = sphi 0, %s146
      %s163 = sphi 0, %s147
    $region4: #{tpu_custom_call.1} parent=1 // loop_header_branch
      %19 = sbr.rel (%p17) target = $region8
    $region5: #{tpu_custom_call.1} parent=1 // loop_body
      %s21 = ssub.s32 %s16, 1
      %s22 = ssub.s32 %s16, 2
      %s32 = sadd.s32 1, %s25
      %p33 = scmp.ge.s32.totalorder %s32, 1
      %s34 = scalar_select %p33, 0, %s32
      %s35 = sadd.s32 1, %s24
      %s36 = scalar_select %p33, %s35, %s24
      %p37 = scmp.ge.s32.totalorder %s36, 1
      %s38 = scalar_select %p37, 0, %s36
      %s39 = sadd.s32 1, %s23
      %s40 = scalar_select %p37, %s39, %s23
      %p41 = scmp.ge.s32.totalorder %s40, 2
      %s42 = scalar_select %p41, 0, %s40
      %s43 = sadd.s32 %s24, %s25
      %p44 = scmp.lt.s32.totalorder %s43, 0
      %s45 = scalar_select %p44, %s43, 0
      %s46 = sadd.s32 %s38, %s34
      %p47 = scmp.lt.s32.totalorder %s46, 0
      %s48 = scalar_select %p47, %s46, 0
      %s49 = ssub.s32 %s23, %s42
      %s50 = ssub.s32 %s45, %s48
      %s51 = sor.u32 %s49, %s50
      %p52 = scmp.eq.s32.totalorder %s51, 0
      %s54 = sadd.s32 %s53, 1
      %s55 = scalar_select %p52, %s53, %s54
      %p58 = pneg %p52
      %p59 = scmp.eq.s32.totalorder %s16, 1
      %p60 = por %p58, %p59
      %p61 = scmp.ne.s32.totalorder %s53, %s56
      %p62 = scmp.eq.s32.totalorder %s16, 0
      %p63 = por %p61, %p62
      %p64 = scmp.ne.s32.totalorder %s53, %s56
      %p65 = scmp.eq.s32.totalorder %s21, 1
      %p66 = por %p64, %p65
      %p67 = scmp.ne.s32.totalorder %s56, %s57
      %p68 = scmp.eq.s32.totalorder %s21, 0
      %p69 = por %p67, %p68
      %p70 = scmp.ne.s32.totalorder %s56, %s57
      %p71 = scmp.eq.s32.totalorder %s22, 1
      %p72 = por %p70, %p71
      %p74 = scmp.ne.s32.totalorder %s57, %s73
      %p75 = scmp.eq.s32.totalorder %s22, 0
      %p76 = por %p74, %p75
      %s77 = sadd.s32 %s24, %s25
      %p78 = scmp.lt.s32.totalorder %s77, 0
      %s79 = scalar_select %p78, %s77, 0
      %s80 = sadd.s32 %s38, %s34
      %p81 = scmp.lt.s32.totalorder %s80, 0
      %s82 = scalar_select %p81, %s80, 0
      %s83 = ssub.s32 %s23, %s42
      %s84 = ssub.s32 %s79, %s82
      %s85 = sor.u32 %s83, %s84
      %p86 = scmp.eq.s32.totalorder %s85, 0
      %s88 = sadd.s32 %s87, 1
      %s89 = scalar_select %p86, %s87, %s88
      %p92 = pneg %p86
      %p93 = scmp.eq.s32.totalorder %s16, 1
      %p94 = por %p92, %p93
      %p95 = scmp.ne.s32.totalorder %s87, %s90
      %p96 = scmp.eq.s32.totalorder %s16, 0
      %p97 = por %p95, %p96
      %p98 = scmp.ne.s32.totalorder %s87, %s90
      %p99 = scmp.eq.s32.totalorder %s21, 1
      %p100 = por %p98, %p99
      %p101 = scmp.ne.s32.totalorder %s90, %s91
      %p102 = scmp.eq.s32.totalorder %s21, 0
      %p103 = por %p101, %p102
      %p104 = scmp.ne.s32.totalorder %s90, %s91
      %p105 = scmp.eq.s32.totalorder %s22, 1
      %p106 = por %p104, %p105
      %p108 = scmp.ne.s32.totalorder %s91, %s107
      %p109 = scmp.eq.s32.totalorder %s22, 0
      %p110 = por %p108, %p109
      %s111 = sadd.s32 %s23, %s24
      %s112 = sadd.s32 %s42, %s38
      %s113 = ssub.s32 %s111, %s112
      %p114 = scmp.eq.s32.totalorder %s113, 0
      %s116 = sadd.s32 %s115, 1
      %s117 = scalar_select %p114, %s115, %s116
      %p120 = pneg %p114
      %p121 = scmp.eq.s32.totalorder %s16, 1
      %p122 = por %p120, %p121
      %p123 = scmp.ne.s32.totalorder %s115, %s118
      %p124 = scmp.eq.s32.totalorder %s16, 0
      %p125 = por %p123, %p124
      %p126 = scmp.ne.s32.totalorder %s115, %s118
      %p127 = scmp.eq.s32.totalorder %s21, 1
      %p128 = por %p126, %p127
      %p129 = scmp.ne.s32.totalorder %s118, %s119
      %p130 = scmp.eq.s32.totalorder %s21, 0
      %p131 = por %p129, %p130
      %p132 = scmp.ne.s32.totalorder %s118, %s119
      %p133 = scmp.eq.s32.totalorder %s22, 1
      %p134 = por %p132, %p133
      %p136 = scmp.ne.s32.totalorder %s119, %s135
      %p137 = scmp.eq.s32.totalorder %s22, 0
      %p138 = por %p136, %p137
      %s139 = sadd.s32 %s23, %s24
      %s140 = sadd.s32 %s42, %s38
      %s141 = ssub.s32 %s139, %s140
      %p142 = scmp.eq.s32.totalorder %s141, 0
      %s144 = sadd.s32 %s143, 1
      %s145 = scalar_select %p142, %s143, %s144
      %p148 = pneg %p142
      %p149 = scmp.eq.s32.totalorder %s16, 1
      %p150 = por %p148, %p149
      %p151 = scmp.ne.s32.totalorder %s143, %s146
      %p152 = scmp.eq.s32.totalorder %s16, 0
      %p153 = por %p151, %p152
      %p154 = scmp.ne.s32.totalorder %s143, %s146
      %p155 = scmp.eq.s32.totalorder %s21, 1
      %p156 = por %p154, %p155
      %p157 = scmp.ne.s32.totalorder %s146, %s147
      %p158 = scmp.eq.s32.totalorder %s21, 0
      %p159 = por %p157, %p158
      %p160 = scmp.ne.s32.totalorder %s146, %s147
      %p161 = scmp.eq.s32.totalorder %s22, 1
      %p162 = por %p160, %p161
      %p164 = scmp.ne.s32.totalorder %s147, %s163
      %p165 = scmp.eq.s32.totalorder %s22, 0
      %p166 = por %p164, %p165
      %p167 = scmp.le.s32.totalorder 1, %s16
      %p168 = scmp.lt.s32.totalorder %s16, 3
      %p169 = pnand %p167, %p168
      %p170 = pneg %p169
      // Predicated region
      $region9: #{tpu_custom_call.1} parent=5 // pred_check
        _
      $region10: #{tpu_custom_call.1} parent=5 // pred_check_branch
        %172 = sbr.rel (%p169) target = $region12
      $region11: #{tpu_custom_call.1} parent=5 // pred_region
        %s173 = ssub.s32 %s16, 1
      $region12: #{tpu_custom_call.1} parent=5 // pred_fallthru
        _
      %p174 = scmp.lt.s32.totalorder %s16, 2
      // Predicated region
      $region13: #{tpu_custom_call.1} parent=5 // pred_check
        %p175 = pneg %p174
      $region14: #{tpu_custom_call.1} parent=5 // pred_check_branch
        %177 = sbr.rel (%p175) target = $region16
      $region15: #{tpu_custom_call.1} parent=5 // pred_region
        // Predicated region
        $region17: #{tpu_custom_call.1} parent=15 // pred_check
          %p178 = pneg %p63
        $region18: #{tpu_custom_call.1} parent=15 // pred_check_branch
          %180 = sbr.rel (%p178) target = $region20
        $region19: #{tpu_custom_call.1} parent=15 // pred_region
          %s181 = sand.u32 %s53, 1
          %s182 = scalar_lea.sflag [#allocation5], %s181
          %s183 = sand.u32 %s53, 1
          %s184 = smul.addr %s183, 8
          %s185 = scalar_lea.vmem [#allocation4], %s184
          %s186 = sadd.s32 %s24, %s25
          %p187 = scmp.lt.s32.totalorder %s186, 0
          %s188 = scalar_select %p187, %s186, 0
          %s189 = smul.u32 2, %s188
          %s191 = ssub.s32 128, 128
          %192 = vsyncadd %s182, %s191
          %s193 = smul.addr %s23, 2
          %s194 = sadd.s32 %s189, %s193
          %s195 = smul.addr %s194, 64
          %s196 = scalar_lea.hbm %s0, %s195
          %s198 = sshll.u32 %s185, 4
          %s199 = int_to_ptr.vmem [resolvable:$true] %s198
          %201 = dma.hbm_to_vmem [thread:$0]  %s196, 128, %s199, %s182
        $region20: #{tpu_custom_call.1} parent=15 // pred_fallthru
          _
        // Predicated region
        $region21: #{tpu_custom_call.1} parent=15 // pred_check
          %p202 = pneg %p97
        $region22: #{tpu_custom_call.1} parent=15 // pred_check_branch
          %204 = sbr.rel (%p202) target = $region24
        $region23: #{tpu_custom_call.1} parent=15 // pred_region
          %s205 = sand.u32 %s87, 1
          %s206 = scalar_lea.sflag [#allocation7], %s205
          %s207 = sand.u32 %s87, 1
          %s208 = smul.addr %s207, 2
          %s209 = scalar_lea.vmem [#allocation6], %s208
          %s210 = sadd.s32 %s24, %s25
          %p211 = scmp.lt.s32.totalorder %s210, 0
          %s212 = scalar_select %p211, %s210, 0
          %s213 = smul.u32 2, %s212
          %s215 = ssub.s32 32, 32
          %216 = vsyncadd %s206, %s215
          %s217 = smul.addr %s23, 2
          %s218 = sadd.s32 %s213, %s217
          %s219 = smul.addr %s218, 16
          %s220 = scalar_lea.hbm %s1, %s219
          %s222 = sshll.u32 %s209, 4
          %s223 = int_to_ptr.vmem [resolvable:$true] %s222
          %225 = dma.hbm_to_vmem [thread:$0]  %s220, 32, %s223, %s206
        $region24: #{tpu_custom_call.1} parent=15 // pred_fallthru
          _
      $region16: #{tpu_custom_call.1} parent=5 // pred_fallthru
        _
      %p226 = scmp.le.s32.totalorder 1, %s16
      %p227 = scmp.lt.s32.totalorder %s16, 3
      %p228 = pnand %p226, %p227
      %p229 = pneg %p228
      // Predicated region
      $region25: #{tpu_custom_call.1} parent=5 // pred_check
        _
      $region26: #{tpu_custom_call.1} parent=5 // pred_check_branch
        %231 = sbr.rel (%p228) target = $region28
      $region27: #{tpu_custom_call.1} parent=5 // pred_region
        %s232 = ssub.s32 %s16, 1
        %s233 = sand.u32 %s56, 1
        %s234 = scalar_lea.sflag [#allocation5], %s233
        %s235 = sand.u32 %s56, 1
        %s236 = smul.addr %s235, 8
        %s237 = scalar_lea.vmem [#allocation4], %s236
        // Predicated region
        $region29: #{tpu_custom_call.1} parent=27 // pred_check
          %p238 = pneg %p69
        $region30: #{tpu_custom_call.1} parent=27 // pred_check_branch
          %240 = sbr.rel (%p238) target = $region32
        $region31: #{tpu_custom_call.1} parent=27 // pred_region
          %241 = dma.done %s234, 128
        $region32: #{tpu_custom_call.1} parent=27 // pred_fallthru
          _
        %s242 = sand.u32 %s90, 1
        %s243 = scalar_lea.sflag [#allocation7], %s242
        %s244 = sand.u32 %s90, 1
        %s245 = smul.addr %s244, 2
        %s246 = scalar_lea.vmem [#allocation6], %s245
        // Predicated region
        $region33: #{tpu_custom_call.1} parent=27 // pred_check
          %p247 = pneg %p103
        $region34: #{tpu_custom_call.1} parent=27 // pred_check_branch
          %249 = sbr.rel (%p247) target = $region36
        $region35: #{tpu_custom_call.1} parent=27 // pred_region
          %250 = dma.done %s243, 32
        $region36: #{tpu_custom_call.1} parent=27 // pred_fallthru
          _
        %s251 = sand.u32 %s56, 1
        %s252 = scalar_lea.sflag [#allocation5], %s251
        %s253 = sand.u32 %s56, 1
        %s254 = smul.addr %s253, 8
        %s255 = scalar_lea.vmem [#allocation4], %s254
        %p256 = pneg %p69
        %p257 = pneg %p66
        %s258 = sand.u32 %s90, 1
        %s259 = scalar_lea.sflag [#allocation7], %s258
        %s260 = sand.u32 %s90, 1
        %s261 = smul.addr %s260, 2
        %s262 = scalar_lea.vmem [#allocation6], %s261
        %p263 = pneg %p103
        %p264 = pneg %p100
        %p265 = pneg %p131
        %p266 = pneg %p128
        %s267 = sadd.s32 %s26, %s27
        %p268 = scmp.lt.s32.totalorder %s267, 1
        %s269 = scalar_select %p268, %s267, 1
        %s270 = scalar_lea.vmem %s2, %s269
        %p271 = pneg %p159
        %p272 = pneg %p156
        %s273 = sadd.s32 %s26, %s27
        %p274 = scmp.lt.s32.totalorder %s273, 1
        %s275 = scalar_select %p274, %s273, 1
        %s276 = scalar_lea.vmem %s3, %s275
        %s277 = sadd.s32 %s27, %s28
        %p278 = scmp.lt.s32.totalorder %s277, 0
        %s279 = scalar_select %p278, %s277, 0
        %s280 = smul.u32 2, %s279
        %s281 = sadd.s32 %s27, %s28
        %p282 = scmp.lt.s32.totalorder %s281, 0
        %s283 = scalar_select %p282, %s281, 0
        %s284 = smul.u32 2, %s283
        %s285 = sadd.s32 %s26, %s27
        %p286 = scmp.lt.s32.totalorder %s285, 1
        %s287 = scalar_select %p286, %s285, 1
        %s288 = scalar_lea.vmem %s2, %s287
        %s289 = sadd.s32 %s26, %s27
        %s290 = sadd.s32 %s26, %s27
        %p291 = scmp.lt.s32.totalorder %s290, 1
        %s292 = scalar_select %p291, %s290, 1
        %s293 = scalar_lea.vmem %s3, %s292
        %s294 = sadd.s32 %s26, %s27
        %p295 = scmp.eq.s32.totalorder %s28, 0
        // Predicated region
        $region37: #{tpu_custom_call.1} parent=27 // pred_check
          %p296 = pneg %p295
        $region38: #{tpu_custom_call.1} parent=27 // pred_check_branch
          %298 = sbr.rel (%p296) target = $region40
        $region39: #{tpu_custom_call.1} parent=27 // pred_region
          %v299 = vlaneseq
          %vm300 = vcmp.ge.s32.totalorder %v299, 0
          %vm301 = vcmp.lt.s32.totalorder %v299, 256
          %vm302 = vmand %vm300, %vm301
          %303 = vst.msk [vmem:[#allocation2] sm:$0x3] %vm302, 0.0
          %304 = vst.msk [vmem:[#allocation3] sm:$0x3] %vm302, 0.0
        $region40: #{tpu_custom_call.1} parent=27 // pred_fallthru
          _
        %v305 = vld [vmem:[%s237] sm:$0xff]
        %v306 = vld [vmem:[%s246] sm:$0x3]
        %v307 = vlaneseq
        %v308 = vand.u32 %v307, 127
        %v309 = vadd.s32 %v308, 128
        %s310 = sadd.s32 %s27, %s28
        %s311 = smul.u32 %s310, 256
        %v312 = vstv %s311
        %v313 = vadd.s32 %v312, %v308
        %v314 = vadd.s32 %v312, %v309
        %vm315 = vcmp.lt.s32.totalorder %v313, 256
        %vm316 = vcmp.lt.s32.totalorder %v314, 256
        %vm317 = vcmp.ne.s32.totalorder %v306, 4294967196
        %v318 = vsel %vm317, 1, 0
        %v319 = vlaneseq
        %v320 = vshrl.u32 %v319, 7
        %v321 = vsub.s32 0, %v320
        %v322 = vrot.slane %v318, %v321
        %v323 = vlaneseq
        %v324 = vshrl.u32 %v323, 7
        %v325 = vsub.s32 1, %v324
        %v326 = vrot.slane %v318, %v325
        %vm327 = vcmp.ne.s32.totalorder %v322, 0
        %vm328 = vcmp.ne.s32.totalorder %v326, 0
        %vm329 = vmand %vm315, %vm327
        %vm330 = vmand %vm316, %vm328
        %vm331 = vcmp.ge.s32.totalorder %v306, 0
        %v332 = vsel %vm331, 1, 0
        %v333 = vlaneseq
        %v334 = vshrl.u32 %v333, 7
        %v335 = vsub.s32 0, %v334
        %v336 = vrot.slane %v332, %v335
        %v337 = vlaneseq
        %v338 = vshrl.u32 %v337, 7
        %v339 = vsub.s32 1, %v338
        %v340 = vrot.slane %v332, %v339
        %vm341 = vcmp.ne.s32.totalorder %v336, 0
        %vm342 = vcmp.ne.s32.totalorder %v340, 0
        %vm343 = vmand %vm329, %vm341
        %vm344 = vmand %vm330, %vm342
        %vm345 = vcmp.lt.s32.totalorder %v306, 4
        %v346 = vsel %vm345, 1, 0
        %v347 = vlaneseq
        %v348 = vshrl.u32 %v347, 7
        %v349 = vsub.s32 0, %v348
        %v350 = vrot.slane %v346, %v349
        %v351 = vlaneseq
        %v352 = vshrl.u32 %v351, 7
        %v353 = vsub.s32 1, %v352
        %v354 = vrot.slane %v346, %v353
        %vm355 = vcmp.ne.s32.totalorder %v350, 0
        %vm356 = vcmp.ne.s32.totalorder %v354, 0
        %vm357 = vmand %vm343, %vm355
        %vm358 = vmand %vm344, %vm356
        %v360 = vcombine.high %v305, %v305
        %vm362 = vcmask 1043456
        %v363 = vsel %vm362, %v305, -inf
        %v364 = vrot.slane %v363, 4
        %v365 = vmax.f32 %v363, %v364
        %v366 = vrot.slane %v365, 2
        %v367 = vmax.f32 %v365, %v366
        %v368 = vrot.slane %v367, 1
        %v369 = vmax.f32 %v367, %v368
        %v370 = vsel %vm362, %v360, -inf
        %v371 = vrot.slane %v370, 4
        %v372 = vmax.f32 %v370, %v371
        %v373 = vrot.slane %v372, 2
        %v374 = vmax.f32 %v372, %v373
        %v375 = vrot.slane %v374, 1
        %v376 = vmax.f32 %v374, %v375
        %v379 = vcombine.low %v369, %v376
        %v381 = vsub.f32 %v305, %v379
        %v382 = vmul.f32 %v381, 1.442695
        %v383 = vpow.pop %v382
        %v385 = vcombine.high %v383, %v383
        %v387 = vsel %vm362, %v383, 0.0
        %v388 = vrot.slane %v387, 4
        %v389 = vadd.f32 %v387, %v388
        %v390 = vrot.slane %v389, 2
        %v391 = vadd.f32 %v389, %v390
        %v392 = vrot.slane %v391, 1
        %v393 = vadd.f32 %v391, %v392
        %v394 = vsel %vm362, %v385, 0.0
        %v395 = vrot.slane %v394, 4
        %v396 = vadd.f32 %v394, %v395
        %v397 = vrot.slane %v396, 2
        %v398 = vadd.f32 %v396, %v397
        %v399 = vrot.slane %v398, 1
        %v400 = vadd.f32 %v398, %v399
        %v401 = vlog2.pop %v393
        %v402 = vmul.f32 %v401, 0.6931472
        %v403 = vlog2.pop %v400
        %v404 = vmul.f32 %v403, 0.6931472
        %v405 = vadd.f32 %v402, %v369
        %v406 = vadd.f32 %v404, %v376
        %v407 = vlaneseq
        %v408 = vshrl.u32 %v407, 7
        %v409 = vlaneseq
        %v410 = vshrl.u32 %v409, 7
        %v411 = vsub.s32 0, %v410
        %v412 = vrot.slane %v306, %v411
        %v413 = vlaneseq
        %v414 = vshrl.u32 %v413, 7
        %v415 = vsub.s32 1, %v414
        %v416 = vrot.slane %v306, %v415
        %vm417 = vcmp.eq.s32.totalorder %v408, %v412
        %vm418 = vcmp.eq.s32.totalorder %v408, %v416
        %v419 = vsel %vm417, %v305, 0.0
        %v420 = vsel %vm418, %v360, 0.0
        %v421 = vsel %vm362, %v419, 0.0
        %v422 = vrot.slane %v421, 4
        %v423 = vadd.f32 %v421, %v422
        %v424 = vrot.slane %v423, 2
        %v425 = vadd.f32 %v423, %v424
        %v426 = vrot.slane %v425, 1
        %v427 = vadd.f32 %v425, %v426
        %v428 = vsel %vm362, %v420, 0.0
        %v429 = vrot.slane %v428, 4
        %v430 = vadd.f32 %v428, %v429
        %v431 = vrot.slane %v430, 2
        %v432 = vadd.f32 %v430, %v431
        %v433 = vrot.slane %v432, 1
        %v434 = vadd.f32 %v432, %v433
        %v435 = vsub.f32 %v405, %v427
        %v436 = vsub.f32 %v406, %v434
        %v437 = vsel %vm357, 1, 0
        %v438 = vsel %vm358, 1, 0
        %v439 = vcvt.s32.f32 %v437
        %v440 = vcvt.s32.f32 %v438
        %v441 = vld [vmem:[#allocation2] sm:$0x3]
        %v442 = vsel %vm357, %v435, 0.0
        %v443 = vsel %vm358, %v436, 0.0
        %v446 = vcombine.low %v442, %v443
        %v448 = vunpack.c.l.s4 1966171168
        %v449 = vunpack.c.0.s8 %v448
        %v450 = vlaneseq
        %v451 = vshrl.u32 %v450, 7
        %v452 = vsub.s32 %v449, %v451
        %v453 = vrot.slane %v446, %v452
        %v455 = vunpack.c.l.s4 1966171168
        %v456 = vunpack.c.0.s8 %v455
        %v457 = vlaneseq
        %v458 = vshrl.u32 %v457, 7
        %v459 = vsub.s32 %v456, %v458
        %v460 = vrot.slane %v453, %v459
        %v462 = vadd.f32 %v441, %v460
        %v463 = vlaneseq
        %vm464 = vcmp.ge.s32.totalorder %v463, 0
        %vm465 = vcmp.lt.s32.totalorder %v463, 256
        %vm466 = vmand %vm464, %vm465
        %467 = vst.msk [vmem:[#allocation2] sm:$0x3] %vm466, %v462
        %v468 = vld [vmem:[#allocation3] sm:$0x3]
        %v471 = vcombine.low %v439, %v440
        %v473 = vunpack.c.l.s4 1966171168
        %v474 = vunpack.c.0.s8 %v473
        %v475 = vlaneseq
        %v476 = vshrl.u32 %v475, 7
        %v477 = vsub.s32 %v474, %v476
        %v478 = vrot.slane %v471, %v477
        %v480 = vunpack.c.l.s4 1966171168
        %v481 = vunpack.c.0.s8 %v480
        %v482 = vlaneseq
        %v483 = vshrl.u32 %v482, 7
        %v484 = vsub.s32 %v481, %v483
        %v485 = vrot.slane %v478, %v484
        %v487 = vadd.f32 %v468, %v485
        %488 = vst.msk [vmem:[#allocation3] sm:$0x3] %vm466, %v487
        // Predicated region
        $region41: #{tpu_custom_call.1} parent=27 // pred_check
          %p489 = pneg %p295
        $region42: #{tpu_custom_call.1} parent=27 // pred_check_branch
          %491 = sbr.rel (%p489) target = $region44
        $region43: #{tpu_custom_call.1} parent=27 // pred_region
          %v492 = vld [vmem:[#allocation2] sm:$0x3]
          %v494 = vlaneseq
          %v495 = vshrl.u32 %v494, 7
          %v496 = vsub.s32 0, %v495
          %v497 = vrot.slane %v492, %v496
          %v498 = vlaneseq
          %v499 = vshrl.u32 %v498, 7
          %v500 = vsub.s32 1, %v499
          %v501 = vrot.slane %v492, %v500
          %vm504 = vcmask 1040384
          %v505 = vsel %vm504, %v497, 0.0
          %v506 = vsel %vm504, %v501, 0.0
          %v507 = vadd.f32 %v505, %v506
          %508 = vadd.xlane.f32.xlu0 %v507
          %v509 = vpop.xlane.xlu0 %508
          %vm510 = vcmask 0
          %511 = vst.msk [vmem:[%s288] sm:$0x1] %vm510, %v509
          %v512 = vld [vmem:[#allocation3] sm:$0x3]
          %v514 = vlaneseq
          %v515 = vshrl.u32 %v514, 7
          %v516 = vsub.s32 0, %v515
          %v517 = vrot.slane %v512, %v516
          %v518 = vlaneseq
          %v519 = vshrl.u32 %v518, 7
          %v520 = vsub.s32 1, %v519
          %v521 = vrot.slane %v512, %v520
          %v524 = vsel %vm504, %v517, 0.0
          %v525 = vsel %vm504, %v521, 0.0
          %v526 = vadd.f32 %v524, %v525
          %527 = vadd.xlane.f32.xlu0 %v526
          %v528 = vpop.xlane.xlu0 %527
          %529 = vst.msk [vmem:[%s293] sm:$0x1] %vm510, %v528
        $region44: #{tpu_custom_call.1} parent=27 // pred_fallthru
          _
        %s530 = sadd.s32 %s26, %s27
        %p531 = scmp.lt.s32.totalorder %s530, 1
        %s532 = scalar_select %p531, %s530, 1
        %s533 = scalar_lea.vmem %s2, %s532
        %s534 = sadd.s32 %s26, %s27
        %p535 = scmp.lt.s32.totalorder %s534, 1
        %s536 = scalar_select %p535, %s534, 1
        %s537 = scalar_lea.vmem %s3, %s536
        // Predicated region
        $region45: #{tpu_custom_call.1} parent=27 // pred_check
          %p538 = pneg %p128
        $region46: #{tpu_custom_call.1} parent=27 // pred_check_branch
          %540 = sbr.rel (%p538) target = $region48
        $region47: #{tpu_custom_call.1} parent=27 // pred_region
          %s541 = sadd.s32 %s26, %s27
        $region48: #{tpu_custom_call.1} parent=27 // pred_fallthru
          _
        // Predicated region
        $region49: #{tpu_custom_call.1} parent=27 // pred_check
          %p542 = pneg %p156
        $region50: #{tpu_custom_call.1} parent=27 // pred_check_branch
          %544 = sbr.rel (%p542) target = $region52
        $region51: #{tpu_custom_call.1} parent=27 // pred_region
          %s545 = sadd.s32 %s26, %s27
        $region52: #{tpu_custom_call.1} parent=27 // pred_fallthru
          _
      $region28: #{tpu_custom_call.1} parent=5 // pred_fallthru
        _
      %p546 = scmp.le.s32.totalorder 2, %s16
      // Predicated region
      $region53: #{tpu_custom_call.1} parent=5 // pred_check
        %p547 = pneg %p546
      $region54: #{tpu_custom_call.1} parent=5 // pred_check_branch
        %549 = sbr.rel (%p547) target = $region56
      $region55: #{tpu_custom_call.1} parent=5 // pred_region
        %s550 = ssub.s32 %s16, 2
        // Predicated region
        $region57: #{tpu_custom_call.1} parent=55 // pred_check
          %p551 = pneg %p134
        $region58: #{tpu_custom_call.1} parent=55 // pred_check_branch
          %553 = sbr.rel (%p551) target = $region60
        $region59: #{tpu_custom_call.1} parent=55 // pred_region
          %s554 = sadd.s32 %s29, %s30
          %p555 = scmp.lt.s32.totalorder %s554, 1
          %s556 = scalar_select %p555, %s554, 1
          %s557 = scalar_lea.vmem %s2, %s556
        $region60: #{tpu_custom_call.1} parent=55 // pred_fallthru
          _
        // Predicated region
        $region61: #{tpu_custom_call.1} parent=55 // pred_check
          %p558 = pneg %p162
        $region62: #{tpu_custom_call.1} parent=55 // pred_check_branch
          %560 = sbr.rel (%p558) target = $region64
        $region63: #{tpu_custom_call.1} parent=55 // pred_region
          %s561 = sadd.s32 %s29, %s30
          %p562 = scmp.lt.s32.totalorder %s561, 1
          %s563 = scalar_select %p562, %s561, 1
          %s564 = scalar_lea.vmem %s3, %s563
        $region64: #{tpu_custom_call.1} parent=55 // pred_fallthru
          _
      $region56: #{tpu_custom_call.1} parent=5 // pred_fallthru
        _
    $region6: #{tpu_custom_call.1} parent=1 // loop_footer
      %s20 = sadd.s32 1, %s16
    $region7: #{tpu_custom_call.1} parent=1 // loop_footer_branch
      %15 = sbr.rel target = $region3
    $region8: #{tpu_custom_call.1} parent=1 // loop_exit
      _
    %565 = vsyncpa [#allocation5], 1
    %s566 = scalar_lea.sflag [#allocation5], 1
    %567 = vsyncpa %s566, 1
    %568 = vsyncpa [#allocation7], 1
    %s569 = scalar_lea.sflag [#allocation7], 1
    %570 = vsyncpa %s569, 1

</llo_original>
